<compile_context>
chip_gen: v5e
topology: v5e:2x2
jax: 0.10.0
libtpu: 0.0.40
codegen_flags: <defaults>
</compile_context>

<pallas_src>
import functools

import numpy as np
import jax
import jax.numpy as jnp
from jax.experimental import pallas as pl
from jax.experimental.pallas import tpu as pltpu

THRESH = 1.0  # PLIF constructor default (plain constant, not learnable)


def plif_kernel(x_ref, tau_ref, o_ref, mem_ref, *, thresh):
    """One (b_block, row_block, t) grid step of the PLIF recurrence.

    x_ref  : (b_blk, row_blk, 128) input at time t (T dim squeezed away)
    tau_ref: (row_blk, 1) or (row_blk, 128) f32 sigmoid(tau)
    o_ref  : (b_blk, row_blk, 128) spikes at time t
    mem_ref: (b_blk, row_blk, 128) f32 VMEM scratch carrying mem across t
    """
    t = pl.program_id(2)

    @pl.when(t == 0)
    def _():
        mem_ref[...] = jnp.zeros_like(mem_ref)

    x = x_ref[...].astype(jnp.float32)
    mem = mem_ref[...] * tau_ref[...] + x        # tau lane-broadcast on the VPU
    fired = mem > thresh                         # ZIF fwd: (mem - thresh > 0)
    o_ref[...] = jnp.where(fired, 1.0, 0.0).astype(o_ref.dtype)
    mem_ref[...] = jnp.where(fired, 0.0, mem)    # hard reset, reuse comparison


def _vmem_limit_bytes():
    """Per-generation scoped-VMEM budget (v7x: 48 MiB, v5e/v6e: 96 MiB)."""
    try:
        cap = int(pltpu.get_tpu_info().vmem_capacity_bytes)
    except Exception:
        cap = 64 << 20  # conservative fallback: v7x per-TensorCore VMEM
    return min((cap * 3) // 4, 100 << 20)


def _choose_blocks(B, rows, tile_target, min_tile=1 << 20, want_parallel=2):
    """Pick (b_blk, row_blk). One f32 tile is b_blk*row_blk*128*4 bytes.

    Split rows first (keeps per-(b, t) DMA segments long), then batch, until
    the tile fits the VMEM target.  Then, if everything landed in a single
    block, split once more for v7x megacore -- but never below the ~1 MiB
    floor where per-step pipeline overhead dominates.
    """
    def tile_bytes(b, r):
        return b * r * 128 * 4

    b_blk, row_blk = B, rows
    while row_blk % 16 == 0 and tile_bytes(b_blk, row_blk) > tile_target:
        row_blk //= 2
    while b_blk % 2 == 0 and tile_bytes(b_blk, row_blk) > tile_target:
        b_blk //= 2

    if (B // b_blk) * (rows // row_blk) < want_parallel:
        if row_blk % 16 == 0 and tile_bytes(b_blk, row_blk // 2) >= min_tile:
            row_blk //= 2
        elif b_blk % 2 == 0 and tile_bytes(b_blk // 2, row_blk) >= min_tile:
            b_blk //= 2
    return b_blk, row_blk


def plif_forward(x, tau_param, thresh=THRESH):
    """x: (B, T, C, H, W), tau_param: (C,) learnable. Returns spikes, same shape/dtype."""
    B, T, C, H, W = x.shape
    HW = H * W
    N = C * HW
    in_dtype = x.dtype

    # Lane-dense flattened layout (trailing reshape only, no transpose).
    N_pad = ((N + 127) // 128) * 128
    rows = N_pad // 128
    xf = x.reshape(B, T, N)
    if N_pad != N:
        xf = jnp.pad(xf, ((0, 0), (0, 0), (0, N_pad - N)))
    x4 = xf.reshape(B, T, rows, 128)

    tau = jax.nn.sigmoid(tau_param.astype(jnp.float32))  # (C,)
    if HW % 128 == 0:
        # Each 128-lane row lies entirely within one channel: tiny per-row tau,
        # broadcast over lanes inside the kernel (negligible HBM traffic).
        tau_rows = jnp.repeat(tau, HW // 128).reshape(rows, 1)
    else:
        # Ragged spatial size: per-element tau (still only ~C*H*W*4 bytes).
        tau_flat = jnp.broadcast_to(tau[:, None], (C, HW)).reshape(N)
        if N_pad != N:
            tau_flat = jnp.pad(tau_flat, (0, N_pad - N))
        tau_rows = tau_flat.reshape(rows, 128)
    tau_lanes = tau_rows.shape[1]

    vmem_limit = _vmem_limit_bytes()
    # Resident set ~= 2x in + 2x out + mem scratch (+tau) ~= 5.2x one tile.
    b_blk, row_blk = _choose_blocks(B, rows, tile_target=vmem_limit // 6)

    out4 = pl.pallas_call(
        functools.partial(plif_kernel, thresh=float(thresh)),
        out_shape=jax.ShapeDtypeStruct((B, T, rows, 128), in_dtype),
        grid_spec=pltpu.PrefetchScalarGridSpec(
            num_scalar_prefetch=0,
            # T innermost: membrane carried across t for each (batch, row) block.
            grid=(B // b_blk, rows // row_blk, T),
            in_specs=[
                pl.BlockSpec((b_blk, pl.Squeezed(), row_blk, 128),
                             lambda b, r, t: (b, t, r, 0)),
                pl.BlockSpec((row_blk, tau_lanes),
                             lambda b, r, t: (r, 0)),
            ],
            out_specs=pl.BlockSpec((b_blk, pl.Squeezed(), row_blk, 128),
                                   lambda b, r, t: (b, t, r, 0)),
            scratch_shapes=[pltpu.VMEM((b_blk, row_blk, 128), jnp.float32)],
        ),
        compiler_params=pltpu.CompilerParams(
            dimension_semantics=("parallel", "parallel", "arbitrary"),
            vmem_limit_bytes=vmem_limit),
    )(x4, tau_rows)

    out = out4.reshape(B, T, N_pad)
    if N_pad != N:
        out = out[:, :, :N]
    return out.reshape(B, T, C, H, W)


def plif_reference(x, tau_param, thresh=THRESH):
    """Pure-JAX reference of PLIF.forward (forward identical for train/eval)."""
    B, T, C, H, W = x.shape
    tau = jax.nn.sigmoid(tau_param.astype(jnp.float32)).reshape(1, C, 1, 1)

    def step(mem, xt):
        mem = mem * tau + xt
        spike = (mem > thresh).astype(jnp.float32)
        mem = (1.0 - spike) * mem
        return mem, spike

    mem0 = jnp.zeros((B, C, H, W), jnp.float32)
    _, spikes = jax.lax.scan(step, mem0, jnp.moveaxis(x.astype(jnp.float32), 1, 0))
    return jnp.moveaxis(spikes, 0, 1)


if __name__ == "__main__":
    # PLIF(channel=4): x is (B, T, C, H, W)
    B, T, C, H, W = 2, 8, 4, 16, 16

    key = jax.random.PRNGKey(0)
    kx, kt = jax.random.split(key)
    x = jax.random.normal(kx, (B, T, C, H, W), dtype=jnp.float32)
    # learnable per-channel tau parameter (module inits to zeros; use random
    # values here to exercise the per-channel path)
    tau_param = 0.5 * jax.random.normal(kt, (C,), dtype=jnp.float32)

    out = plif_forward(x, tau_param)
    out = jax.block_until_ready(out)

    assert out.shape == (B, T, C, H, W), out.shape
    # spikes must be binary
    assert bool(jnp.all((out == 0.0) | (out == 1.0)))
    # match the pure-JAX reference of the PyTorch forward
    ref = plif_reference(x, tau_param)
    np.testing.assert_allclose(np.asarray(out), np.asarray(ref), atol=1e-5)

    # TODO(synk): ZIF/DSPIKE surrogate gradients are backward-pass constructs;
    # this kernel implements the forward pass only (spike = (mem - thresh > 0)).
    print("KERNEL_OK")
</pallas_src>

<mosaic_0001>
module attributes {stable_mosaic.version = 11 : i64} {
  func.func @plif_kernel(%arg0: i32, %arg1: i32, %arg2: i32, %arg3: memref<2x1x8x128xf32, #tpu.memory_space<vmem>>, %arg4: memref<8x1xf32, #tpu.memory_space<vmem>>, %arg5: memref<2x1x8x128xf32, #tpu.memory_space<vmem>>, %arg6: memref<2x8x128xf32, #tpu.memory_space<vmem>>) attributes {dimension_semantics = [#tpu.dimension_semantics<parallel>, #tpu.dimension_semantics<parallel>, #tpu.dimension_semantics<arbitrary>], iteration_bounds = array<i64: 1, 1, 8>, scalar_prefetch = 0 : i64, scratch_operands = 1 : i64, tpu.core_type = #tpu.core_type<tc>, window_params = [{transform_indices = @transform_0, window_bounds = array<i64: 2, 1, 8, 128>}, {transform_indices = @transform_1, window_bounds = array<i64: 8, 1>}, {transform_indices = @transform_2, window_bounds = array<i64: 2, 1, 8, 128>}]} {
    %c0_i32 = arith.constant 0 : i32
    %0 = arith.cmpi eq, %arg2, %c0_i32 : i32
    %1 = arith.extui %0 : i1 to i32
    %c0_i32_0 = arith.constant 0 : i32
    %2 = arith.cmpi ne, %1, %c0_i32_0 : i32
    scf.if %2 {
      %cst_19 = arith.constant 0.000000e+00 : f32
      %22 = vector.broadcast %cst_19 : f32 to vector<2x8x128xf32>
      %c0_20 = arith.constant 0 : index
      %c0_21 = arith.constant 0 : index
      %c0_22 = arith.constant 0 : index
      %23 = vector.load %arg6[%c0_20, %c0_21, %c0_22] : memref<2x8x128xf32, #tpu.memory_space<vmem>>, vector<2x8x128xf32>
      tpu.vector_store %arg6[%c0_20, %c0_21, %c0_22], %22 {strides = array<i32>} : memref<2x8x128xf32, #tpu.memory_space<vmem>>, vector<2x8x128xf32>,
    } else {
    }
    %c0 = arith.constant 0 : index
    %c0_1 = arith.constant 0 : index
    %c0_2 = arith.constant 0 : index
    %c0_3 = arith.constant 0 : index
    %3 = vector.load %arg3[%c0, %c0_1, %c0_2, %c0_3] : memref<2x1x8x128xf32, #tpu.memory_space<vmem>>, vector<2x1x8x128xf32>
    %4 = vector.shape_cast %3 : vector<2x1x8x128xf32> to vector<2x8x128xf32>
    %c0_4 = arith.constant 0 : index
    %c0_5 = arith.constant 0 : index
    %c0_6 = arith.constant 0 : index
    %5 = vector.load %arg6[%c0_4, %c0_5, %c0_6] : memref<2x8x128xf32, #tpu.memory_space<vmem>>, vector<2x8x128xf32>
    %c0_7 = arith.constant 0 : index
    %c0_8 = arith.constant 0 : index
    %6 = vector.load %arg4[%c0_7, %c0_8] : memref<8x1xf32, #tpu.memory_space<vmem>>, vector<8x1xf32>
    %7 = vector.shape_cast %6 : vector<8x1xf32> to vector<1x8x1xf32>
    %8 = vector.broadcast %7 : vector<1x8x1xf32> to vector<2x8x128xf32>
    %9 = arith.mulf %5, %8 : vector<2x8x128xf32>
    %10 = arith.addf %9, %4 : vector<2x8x128xf32>
    %cst = arith.constant 1.000000e+00 : f32
    %11 = vector.broadcast %cst : f32 to vector<2x8x128xf32>
    %12 = arith.cmpf ogt, %10, %11 : vector<2x8x128xf32>
    %cst_9 = arith.constant 1.000000e+00 : f32
    %cst_10 = arith.constant 0.000000e+00 : f32
    %13 = vector.broadcast %cst_9 : f32 to vector<2x8x128xf32>
    %14 = vector.broadcast %cst_10 : f32 to vector<2x8x128xf32>
    %15 = arith.select %12, %13, %14 : vector<2x8x128xi1>, vector<2x8x128xf32>
    %c0_11 = arith.constant 0 : index
    %c0_12 = arith.constant 0 : index
    %c0_13 = arith.constant 0 : index
    %c0_14 = arith.constant 0 : index
    %16 = vector.load %arg5[%c0_11, %c0_12, %c0_13, %c0_14] : memref<2x1x8x128xf32, #tpu.memory_space<vmem>>, vector<2x1x8x128xf32>
    %17 = vector.shape_cast %16 : vector<2x1x8x128xf32> to vector<2x8x128xf32>
    %18 = vector.shape_cast %15 : vector<2x8x128xf32> to vector<2x1x8x128xf32>
    tpu.vector_store %arg5[%c0_11, %c0_12, %c0_13, %c0_14], %18 {strides = array<i32>} : memref<2x1x8x128xf32, #tpu.memory_space<vmem>>, vector<2x1x8x128xf32>,
    %cst_15 = arith.constant 0.000000e+00 : f32
    %19 = vector.broadcast %cst_15 : f32 to vector<2x8x128xf32>
    %20 = arith.select %12, %19, %10 : vector<2x8x128xi1>, vector<2x8x128xf32>
    %c0_16 = arith.constant 0 : index
    %c0_17 = arith.constant 0 : index
    %c0_18 = arith.constant 0 : index
    %21 = vector.load %arg6[%c0_16, %c0_17, %c0_18] : memref<2x8x128xf32, #tpu.memory_space<vmem>>, vector<2x8x128xf32>
    tpu.vector_store %arg6[%c0_16, %c0_17, %c0_18], %20 {strides = array<i32>} : memref<2x8x128xf32, #tpu.memory_space<vmem>>, vector<2x8x128xf32>,
    return
  }
  func.func @transform_0(%arg0: i32, %arg1: i32, %arg2: i32) -> (i32, i32, i32, i32) {
    %c0_i32 = arith.constant 0 : i32
    %c0_i32_0 = arith.constant 0 : i32
    return %arg0, %arg2, %arg1, %c0_i32 : i32, i32, i32, i32
  }
  func.func @transform_1(%arg0: i32, %arg1: i32, %arg2: i32) -> (i32, i32) {
    %c0_i32 = arith.constant 0 : i32
    %c0_i32_0 = arith.constant 0 : i32
    return %arg1, %c0_i32 : i32, i32
  }
  func.func @transform_2(%arg0: i32, %arg1: i32, %arg2: i32) -> (i32, i32, i32, i32) {
    %c0_i32 = arith.constant 0 : i32
    %c0_i32_0 = arith.constant 0 : i32
    return %arg0, %arg2, %arg1, %c0_i32 : i32, i32, i32, i32
  }
}

</mosaic_0001>

<llo_original>
// kernel: tpu_custom_call.1
$region0: #{tpu_custom_call.1}
  #allocation0 [shape = 'u32[]', space=smem, size = 0x4, offset = 0x4, fixed_abs, tag = 'smem constant byte address 0x4 - core index']
  #allocation1 [shape = 'u32[72,128]{1,0:T(1,128)}', space=vmem, size = 0x9000, scoped, tag = 'internal scratch']
  #allocation2 [shape = 'f32[2,8,128]{2,1,0:T(8,128)}', space=vmem, size = 0x2000, scoped, tag = 'scratch operand']
  %s0 = inlined_call_operand.hbm [shape: f32[2,8,8,128], index: 0, kind: input, shape index: {}]
  %s1 = inlined_call_operand.vmem [shape: f32[8,1], index: 1, kind: input, shape index: {}]
  %s2 = inlined_call_operand.hbm [shape: f32[2,8,8,128], index: 2, kind: output, shape index: {}]
  %s3 = sld [smem:[#allocation0]]
  $region49: #{tpu_custom_call.1} parent=0
    _
  %s5 = ssub.s32 1, %s3
  %s6 = scalar_select 0, %s5, %s3
  $region1: #{tpu_custom_call.1} parent=0
    #allocation3 [shape = 'u8[16384]{0}', space=vmem, size = 0x4000, scoped, tag = 'input window, operand 0']
    #allocation4 [shape = 's32[2]{0}', space=sflag, size = 0x8, scoped, tag = 'scoped memory for tpu_custom_call.1']
    #allocation5 [shape = 's32[2]{0}', space=sflag, size = 0x8, scoped, tag = 'scoped memory for tpu_custom_call.1']
    #allocation6 [shape = 'u8[16384]{0}', space=vmem, size = 0x4000, scoped, tag = 'output window, operand 0']
    %7 = vsyncpa [#allocation4], 0
    %s8 = scalar_lea.sflag [#allocation4], 1
    %9 = vsyncpa %s8, 0
    %10 = vsyncpa [#allocation5], 0
    %s11 = scalar_lea.sflag [#allocation5], 1
    %12 = vsyncpa %s11, 0
    loop: start=0, step=1, limit=10
    $region2: #{tpu_custom_call.1} parent=1 // loop_pre_header
      _
    $region3: #{tpu_custom_call.1} parent=1 // loop_header
      %s14 = sphi 0, %s18
      %p15 = scmp.ge.s32.totalorder %s14, 10
      %s21 = sphi 0, %s40
      %s22 = sphi 0, %s36
      %s23 = sphi 0, %s32
      %s24 = sphi 0, %s21
      %s25 = sphi 0, %s22
      %s26 = sphi 0, %s23
      %s27 = sphi 0, %s24
      %s28 = sphi 0, %s25
      %s29 = sphi 0, %s26
      %s47 = sphi 0, %s49
      %s50 = sphi 0, %s47
      %s51 = sphi 0, %s50
      %s67 = sphi 0, %s51
      %s73 = sphi 0, %s75
      %s76 = sphi 0, %s73
      %s77 = sphi 0, %s76
      %s93 = sphi 0, %s77
      %s103 = sphi 0, %s105
      %s106 = sphi 0, %s103
      %s107 = sphi 0, %s106
      %s123 = sphi 0, %s107
    $region4: #{tpu_custom_call.1} parent=1 // loop_header_branch
      %17 = sbr.rel (%p15) target = $region8
    $region5: #{tpu_custom_call.1} parent=1 // loop_body
      %s19 = ssub.s32 %s14, 1
      %s20 = ssub.s32 %s14, 2
      %s30 = sadd.s32 1, %s23
      %p31 = scmp.ge.s32.totalorder %s30, 8
      %s32 = scalar_select %p31, 0, %s30
      %s33 = sadd.s32 1, %s22
      %s34 = scalar_select %p31, %s33, %s22
      %p35 = scmp.ge.s32.totalorder %s34, 1
      %s36 = scalar_select %p35, 0, %s34
      %s37 = sadd.s32 1, %s21
      %s38 = scalar_select %p35, %s37, %s21
      %p39 = scmp.ge.s32.totalorder %s38, 1
      %s40 = scalar_select %p39, 0, %s38
      %s41 = ssub.s32 %s21, %s40
      %s42 = ssub.s32 %s23, %s32
      %s43 = sor.u32 %s41, %s42
      %s44 = ssub.s32 %s22, %s36
      %s45 = sor.u32 %s43, %s44
      %p46 = scmp.eq.s32.totalorder %s45, 0
      %s48 = sadd.s32 %s47, 1
      %s49 = scalar_select %p46, %s47, %s48
      %p52 = pneg %p46
      %p53 = scmp.eq.s32.totalorder %s14, 7
      %p54 = por %p52, %p53
      %p55 = scmp.ne.s32.totalorder %s47, %s50
      %p56 = scmp.eq.s32.totalorder %s14, 0
      %p57 = por %p55, %p56
      %p58 = scmp.ne.s32.totalorder %s47, %s50
      %p59 = scmp.eq.s32.totalorder %s19, 7
      %p60 = por %p58, %p59
      %p61 = scmp.ne.s32.totalorder %s50, %s51
      %p62 = scmp.eq.s32.totalorder %s19, 0
      %p63 = por %p61, %p62
      %p64 = scmp.ne.s32.totalorder %s50, %s51
      %p65 = scmp.eq.s32.totalorder %s20, 7
      %p66 = por %p64, %p65
      %p68 = scmp.ne.s32.totalorder %s51, %s67
      %p69 = scmp.eq.s32.totalorder %s20, 0
      %p70 = por %p68, %p69
      %s71 = ssub.s32 %s22, %s36
      %p72 = scmp.eq.s32.totalorder %s71, 0
      %s74 = sadd.s32 %s73, 1
      %s75 = scalar_select %p72, %s73, %s74
      %p78 = pneg %p72
      %p79 = scmp.eq.s32.totalorder %s14, 7
      %p80 = por %p78, %p79
      %p81 = scmp.ne.s32.totalorder %s73, %s76
      %p82 = scmp.eq.s32.totalorder %s14, 0
      %p83 = por %p81, %p82
      %p84 = scmp.ne.s32.totalorder %s73, %s76
      %p85 = scmp.eq.s32.totalorder %s19, 7
      %p86 = por %p84, %p85
      %p87 = scmp.ne.s32.totalorder %s76, %s77
      %p88 = scmp.eq.s32.totalorder %s19, 0
      %p89 = por %p87, %p88
      %p90 = scmp.ne.s32.totalorder %s76, %s77
      %p91 = scmp.eq.s32.totalorder %s20, 7
      %p92 = por %p90, %p91
      %p94 = scmp.ne.s32.totalorder %s77, %s93
      %p95 = scmp.eq.s32.totalorder %s20, 0
      %p96 = por %p94, %p95
      %s97 = ssub.s32 %s21, %s40
      %s98 = ssub.s32 %s23, %s32
      %s99 = sor.u32 %s97, %s98
      %s100 = ssub.s32 %s22, %s36
      %s101 = sor.u32 %s99, %s100
      %p102 = scmp.eq.s32.totalorder %s101, 0
      %s104 = sadd.s32 %s103, 1
      %s105 = scalar_select %p102, %s103, %s104
      %p108 = pneg %p102
      %p109 = scmp.eq.s32.totalorder %s14, 7
      %p110 = por %p108, %p109
      %p111 = scmp.ne.s32.totalorder %s103, %s106
      %p112 = scmp.eq.s32.totalorder %s14, 0
      %p113 = por %p111, %p112
      %p114 = scmp.ne.s32.totalorder %s103, %s106
      %p115 = scmp.eq.s32.totalorder %s19, 7
      %p116 = por %p114, %p115
      %p117 = scmp.ne.s32.totalorder %s106, %s107
      %p118 = scmp.eq.s32.totalorder %s19, 0
      %p119 = por %p117, %p118
      %p120 = scmp.ne.s32.totalorder %s106, %s107
      %p121 = scmp.eq.s32.totalorder %s20, 7
      %p122 = por %p120, %p121
      %p124 = scmp.ne.s32.totalorder %s107, %s123
      %p125 = scmp.eq.s32.totalorder %s20, 0
      %p126 = por %p124, %p125
      %p127 = scmp.le.s32.totalorder 1, %s14
      %p128 = scmp.lt.s32.totalorder %s14, 9
      %p129 = pnand %p127, %p128
      %p130 = pneg %p129
      // Predicated region
      $region9: #{tpu_custom_call.1} parent=5 // pred_check
        _
      $region10: #{tpu_custom_call.1} parent=5 // pred_check_branch
        %132 = sbr.rel (%p129) target = $region12
      $region11: #{tpu_custom_call.1} parent=5 // pred_region
        %s133 = ssub.s32 %s14, 1
        // Predicated region
        $region13: #{tpu_custom_call.1} parent=11 // pred_check
          %p134 = pneg %p89
        $region14: #{tpu_custom_call.1} parent=11 // pred_check_branch
          %136 = sbr.rel (%p134) target = $region16
        $region15: #{tpu_custom_call.1} parent=11 // pred_region
          %p137 = scmp.lt.s32.totalorder %s25, 0
          %s138 = scalar_select %p137, %s25, 0
          %s139 = smul.addr %s138, 8
          %s140 = scalar_lea.vmem %s1, %s139
        $region16: #{tpu_custom_call.1} parent=11 // pred_fallthru
          _
      $region12: #{tpu_custom_call.1} parent=5 // pred_fallthru
        _
      %p141 = scmp.lt.s32.totalorder %s14, 8
      // Predicated region
      $region17: #{tpu_custom_call.1} parent=5 // pred_check
        %p142 = pneg %p141
      $region18: #{tpu_custom_call.1} parent=5 // pred_check_branch
        %144 = sbr.rel (%p142) target = $region20
      $region19: #{tpu_custom_call.1} parent=5 // pred_region
        // Predicated region
        $region21: #{tpu_custom_call.1} parent=19 // pred_check
          %p145 = pneg %p57
        $region22: #{tpu_custom_call.1} parent=19 // pred_check_branch
          %147 = sbr.rel (%p145) target = $region24
        $region23: #{tpu_custom_call.1} parent=19 // pred_region
          %s148 = sand.u32 %s47, 1
          %s149 = scalar_lea.sflag [#allocation4], %s148
          %s150 = sand.u32 %s47, 1
          %s151 = smul.addr %s150, 16
          %s152 = scalar_lea.vmem [#allocation3], %s151
          %s153 = smul.u32 2, %s21
          %155 = vsyncadd %s149, 0
          %s156 = sadd.s32 %s22, %s23
          %s157 = smul.addr %s153, 8
          %s158 = sadd.s32 %s156, %s157
          %s159 = smul.addr %s158, 8
          %s160 = scalar_lea.hbm %s0, %s159
          %s161 = sshll.u32 %s160, 4
          %s162 = int_to_ptr.hbm [resolvable:$true] %s161
          %s163 = sshll.u32 %s152, 4
          %s164 = int_to_ptr.vmem [resolvable:$true] %s163
          %169 = dma.hbm_to_vmem [thread:$0]  %s162, 256, %s164, %s149, 1024, 128, 8
        $region24: #{tpu_custom_call.1} parent=19 // pred_fallthru
          _
      $region20: #{tpu_custom_call.1} parent=5 // pred_fallthru
        _
      %p170 = scmp.le.s32.totalorder 1, %s14
      %p171 = scmp.lt.s32.totalorder %s14, 9
      %p172 = pnand %p170, %p171
      %p173 = pneg %p172
      // Predicated region
      $region25: #{tpu_custom_call.1} parent=5 // pred_check
        _
      $region26: #{tpu_custom_call.1} parent=5 // pred_check_branch
        %175 = sbr.rel (%p172) target = $region28
      $region27: #{tpu_custom_call.1} parent=5 // pred_region
        %s176 = ssub.s32 %s14, 1
        %s177 = sand.u32 %s50, 1
        %s178 = scalar_lea.sflag [#allocation4], %s177
        %s179 = sand.u32 %s50, 1
        %s180 = smul.addr %s179, 16
        %s181 = scalar_lea.vmem [#allocation3], %s180
        // Predicated region
        $region29: #{tpu_custom_call.1} parent=27 // pred_check
          %p182 = pneg %p63
        $region30: #{tpu_custom_call.1} parent=27 // pred_check_branch
          %184 = sbr.rel (%p182) target = $region32
        $region31: #{tpu_custom_call.1} parent=27 // pred_region
          %186 = dma.done %s178, 256
        $region32: #{tpu_custom_call.1} parent=27 // pred_fallthru
          _
        %s187 = sand.u32 %s50, 1
        %s188 = scalar_lea.sflag [#allocation4], %s187
        %s189 = sand.u32 %s50, 1
        %s190 = smul.addr %s189, 16
        %s191 = scalar_lea.vmem [#allocation3], %s190
        %p192 = pneg %p63
        %p193 = pneg %p60
        %p194 = scmp.lt.s32.totalorder %s25, 0
        %s195 = scalar_select %p194, %s25, 0
        %s196 = smul.addr %s195, 8
        %s197 = scalar_lea.vmem %s1, %s196
        %p198 = pneg %p89
        %p199 = pneg %p86
        %p200 = pneg %p119
        %p201 = pneg %p116
        %s202 = sand.u32 %s106, 1
        %s203 = scalar_lea.sflag [#allocation5], %s202
        %s204 = sand.u32 %s106, 1
        %s205 = smul.addr %s204, 16
        %s206 = scalar_lea.vmem [#allocation6], %s205
        %s207 = smul.u32 2, %s24
        %p208 = scmp.lt.s32.totalorder %s25, 0
        %s209 = scalar_select %p208, %s25, 0
        %s210 = smul.addr %s209, 8
        %s211 = scalar_lea.vmem %s1, %s210
        %s212 = smul.u32 2, %s24
        %p213 = scmp.eq.s32.totalorder %s26, 0
        // Predicated region
        $region33: #{tpu_custom_call.1} parent=27 // pred_check
          %p214 = pneg %p213
        $region34: #{tpu_custom_call.1} parent=27 // pred_check_branch
          %216 = sbr.rel (%p214) target = $region36
        $region35: #{tpu_custom_call.1} parent=27 // pred_region
          %217 = vst [vmem:[#allocation2] sm:$0xff] 0.0
          %218 = vst [vmem:[#allocation2 + $0x8] sm:$0xff] 0.0
        $region36: #{tpu_custom_call.1} parent=27 // pred_fallthru
          _
        %v219 = vld [vmem:[%s181] sm:$0xff]
        %v220 = vld [vmem:[%s181 + $0x8] sm:$0xff]
        %v221 = vld [vmem:[#allocation2] sm:$0xff]
        %v222 = vld [vmem:[#allocation2 + $0x8] sm:$0xff]
        %v223 = vld [vmem:[%s211] sm:$0xff]
        %225 = vset.pattern.permute.xlu0 0
        %226 = vperm.xlu0 %225, %v223
        %v227 = vpop.permute.xlu0 %226
        %v229 = vmul.f32 %v221, %v227
        %v230 = vmul.f32 %v222, %v227
        %v231 = vadd.f32 %v229, %v219
        %v232 = vadd.f32 %v230, %v220
        %vm233 = vcmp.gt.f32.partialorder %v231, 1.0
        %vm234 = vcmp.gt.f32.partialorder %v232, 1.0
        %v235 = vsel %vm233, 1.0, 0.0
        %v236 = vsel %vm234, 1.0, 0.0
        %237 = vst [vmem:[%s206] sm:$0xff] %v235
        %238 = vst [vmem:[%s206 + $0x8] sm:$0xff] %v236
        %v239 = vsel %vm233, 0.0, %v231
        %v240 = vsel %vm234, 0.0, %v232
        %241 = vst [vmem:[#allocation2] sm:$0xff] %v239
        %242 = vst [vmem:[#allocation2 + $0x8] sm:$0xff] %v240
        %s243 = sand.u32 %s106, 1
        %s244 = scalar_lea.sflag [#allocation5], %s243
        %s245 = sand.u32 %s106, 1
        %s246 = smul.addr %s245, 16
        %s247 = scalar_lea.vmem [#allocation6], %s246
        // Predicated region
        $region37: #{tpu_custom_call.1} parent=27 // pred_check
          %p248 = pneg %p116
        $region38: #{tpu_custom_call.1} parent=27 // pred_check_branch
          %250 = sbr.rel (%p248) target = $region40
        $region39: #{tpu_custom_call.1} parent=27 // pred_region
          %s251 = smul.u32 2, %s24
          %253 = vsyncadd %s244, 0
          %s254 = sadd.s32 %s25, %s26
          %s255 = smul.addr %s251, 8
          %s256 = sadd.s32 %s254, %s255
          %s257 = smul.addr %s256, 8
          %s258 = scalar_lea.hbm %s2, %s257
          %s259 = sshll.u32 %s247, 4
          %s260 = int_to_ptr.vmem [resolvable:$true] %s259
          %s261 = sshll.u32 %s258, 4
          %s262 = int_to_ptr.hbm [resolvable:$true] %s261
          %267 = dma.vmem_to_hbm [thread:$0]  %s260, 256, %s262, %s244, 128, 1024, 8
        $region40: #{tpu_custom_call.1} parent=27 // pred_fallthru
          _
      $region28: #{tpu_custom_call.1} parent=5 // pred_fallthru
        _
      %p268 = scmp.le.s32.totalorder 2, %s14
      // Predicated region
      $region41: #{tpu_custom_call.1} parent=5 // pred_check
        %p269 = pneg %p268
      $region42: #{tpu_custom_call.1} parent=5 // pred_check_branch
        %271 = sbr.rel (%p269) target = $region44
      $region43: #{tpu_custom_call.1} parent=5 // pred_region
        %s272 = ssub.s32 %s14, 2
        // Predicated region
        $region45: #{tpu_custom_call.1} parent=43 // pred_check
          %p273 = pneg %p122
        $region46: #{tpu_custom_call.1} parent=43 // pred_check_branch
          %275 = sbr.rel (%p273) target = $region48
        $region47: #{tpu_custom_call.1} parent=43 // pred_region
          %s276 = sand.u32 %s107, 1
          %s277 = scalar_lea.sflag [#allocation5], %s276
          %s278 = sand.u32 %s107, 1
          %s279 = smul.addr %s278, 16
          %s280 = scalar_lea.vmem [#allocation6], %s279
          %282 = dma.done %s277, 256
        $region48: #{tpu_custom_call.1} parent=43 // pred_fallthru
          _
      $region44: #{tpu_custom_call.1} parent=5 // pred_fallthru
        _
    $region6: #{tpu_custom_call.1} parent=1 // loop_footer
      %s18 = sadd.s32 1, %s14
    $region7: #{tpu_custom_call.1} parent=1 // loop_footer_branch
      %13 = sbr.rel target = $region3
    $region8: #{tpu_custom_call.1} parent=1 // loop_exit
      _
    %283 = vsyncpa [#allocation4], 1
    %s284 = scalar_lea.sflag [#allocation4], 1
    %285 = vsyncpa %s284, 1
    %286 = vsyncpa [#allocation5], 1
    %s287 = scalar_lea.sflag [#allocation5], 1
    %288 = vsyncpa %s287, 1

</llo_original>
